<compile_context>
chip_gen: v6e
topology: v6e:2x2x1
jax: 0.10.0
libtpu: 0.0.40
codegen_flags: <defaults>
</compile_context>

<pallas_src>
import jax
import jax.numpy as jnp
from jax.experimental import pallas as pl
from jax.experimental.pallas import tpu as pltpu


LANES = 512            # lane-dense slab width (multiple of 128)
SUBLANES = 8           # minimal sublane alignment
MAX_TILE_ROWS = 1024   # 1024 x 512 x 4B = 2 MiB per f32 buffer


def _poly_kernel(params_ref, x_ref, o_ref):
    # params_ref: SMEM (3,) f32 -> [alpha, beta, c]   (scalar-prefetched)
    alpha = params_ref[0]
    beta = params_ref[1]
    c = params_ref[2]
    x = x_ref[...].astype(jnp.float32)
    y = (alpha * x + beta) * x + c          # Horner: one vmul fewer
    o_ref[...] = y.astype(o_ref.dtype)


def polynom_act(x, alpha, beta, c):
    """y = alpha * x**2 + beta * x + c, elementwise.

    x: any-shape array (e.g. NCHW activation).  alpha/beta/c: shape-(1,) params.
    """
    orig_shape = x.shape
    out_dtype = x.dtype

    flat = x.reshape(-1)
    n = flat.shape[0]

    # Align to a (SUBLANES, LANES) slab.  Aligned inputs skip the pad copy.
    align = LANES * SUBLANES
    n_pad = ((n + align - 1) // align) * align
    needs_pad = n_pad != n
    if needs_pad:
        flat = jnp.pad(flat, (0, n_pad - n))

    rows = n_pad // LANES
    x2d = flat.reshape(rows, LANES)

    tile_rows = min(MAX_TILE_ROWS, rows)     # both are multiples of SUBLANES
    grid = (pl.cdiv(rows, tile_rows),)       # ragged last tile handled by Pallas

    params = jnp.concatenate(
        [alpha.reshape(-1), beta.reshape(-1), c.reshape(-1)]
    ).astype(jnp.float32)

    out2d = pl.pallas_call(
        _poly_kernel,
        out_shape=jax.ShapeDtypeStruct((rows, LANES), out_dtype),
        grid_spec=pltpu.PrefetchScalarGridSpec(
            num_scalar_prefetch=1,
            grid=grid,
            in_specs=[pl.BlockSpec((tile_rows, LANES), lambda i, p: (i, 0))],
            out_specs=pl.BlockSpec((tile_rows, LANES), lambda i, p: (i, 0)),
        ),
        compiler_params=pltpu.CompilerParams(
            dimension_semantics=("parallel",),
        ),
    )(params, x2d)

    out = out2d.reshape(-1)
    if needs_pad:
        out = out[:n]
    return out.reshape(orig_shape)


if __name__ == "__main__":
    key = jax.random.PRNGKey(0)
    kx, ka, kb, kc = jax.random.split(key, 4)

    # Small NCHW input consistent with a conv-net activation.
    x = jax.random.normal(kx, (2, 4, 16, 16), dtype=jnp.float32)

    # Deterministic "randn(1)" parameters (synthetic init, no checkpoint).
    alpha = jax.random.normal(ka, (1,), dtype=jnp.float32)
    beta = jax.random.normal(kb, (1,), dtype=jnp.float32)
    c = jax.random.normal(kc, (1,), dtype=jnp.float32)

    y = polynom_act(x, alpha, beta, c)
    y = jax.block_until_ready(y)

    # Reference check in plain JAX (same semantics as the PyTorch forward).
    y_ref = alpha[0] * x ** 2 + beta[0] * x + c[0]
    assert y.shape == x.shape
    assert y.dtype == x.dtype
    assert jnp.allclose(y, y_ref, atol=1e-5, rtol=1e-5)

    print("KERNEL_OK")
</pallas_src>

<mosaic_0001>
module attributes {stable_mosaic.version = 11 : i64} {
  func.func @_poly_kernel(%arg0: i32, %arg1: memref<3xf32, #tpu.memory_space<smem>>, %arg2: memref<8x512xf32, #tpu.memory_space<vmem>>, %arg3: memref<8x512xf32, #tpu.memory_space<vmem>>) attributes {dimension_semantics = [#tpu.dimension_semantics<parallel>], iteration_bounds = array<i64: 1>, scalar_prefetch = 1 : i64, scratch_operands = 0 : i64, tpu.core_type = #tpu.core_type<tc>, window_params = [{transform_indices = @transform_0, window_bounds = array<i64: 8, 512>}, {transform_indices = @transform_1, window_bounds = array<i64: 8, 512>}]} {
    %c0 = arith.constant 0 : index
    %0 = memref.load %arg1[%c0] : memref<3xf32, #tpu.memory_space<smem>>
    %c1 = arith.constant 1 : index
    %1 = memref.load %arg1[%c1] : memref<3xf32, #tpu.memory_space<smem>>
    %c2 = arith.constant 2 : index
    %2 = memref.load %arg1[%c2] : memref<3xf32, #tpu.memory_space<smem>>
    %c0_0 = arith.constant 0 : index
    %c0_1 = arith.constant 0 : index
    %3 = vector.load %arg2[%c0_0, %c0_1] : memref<8x512xf32, #tpu.memory_space<vmem>>, vector<8x512xf32>
    %4 = vector.broadcast %0 : f32 to vector<8x512xf32>
    %5 = arith.mulf %4, %3 : vector<8x512xf32>
    %6 = vector.broadcast %1 : f32 to vector<8x512xf32>
    %7 = arith.addf %5, %6 : vector<8x512xf32>
    %8 = arith.mulf %7, %3 : vector<8x512xf32>
    %9 = vector.broadcast %2 : f32 to vector<8x512xf32>
    %10 = arith.addf %8, %9 : vector<8x512xf32>
    %c0_2 = arith.constant 0 : index
    %c0_3 = arith.constant 0 : index
    %11 = vector.load %arg3[%c0_2, %c0_3] : memref<8x512xf32, #tpu.memory_space<vmem>>, vector<8x512xf32>
    tpu.vector_store %arg3[%c0_2, %c0_3], %10 {strides = array<i32>} : memref<8x512xf32, #tpu.memory_space<vmem>>, vector<8x512xf32>,
    return
  }
  func.func @transform_0(%arg0: i32, %arg1: memref<3xf32, #tpu.memory_space<smem>>) -> (i32, i32) {
    %c0_i32 = arith.constant 0 : i32
    %c0_i32_0 = arith.constant 0 : i32
    return %arg0, %c0_i32 : i32, i32
  }
  func.func @transform_1(%arg0: i32, %arg1: memref<3xf32, #tpu.memory_space<smem>>) -> (i32, i32) {
    %c0_i32 = arith.constant 0 : i32
    %c0_i32_0 = arith.constant 0 : i32
    return %arg0, %c0_i32 : i32, i32
  }
}

</mosaic_0001>

<llo_original>
// kernel: tpu_custom_call.1
$region0: #{tpu_custom_call.1}
  #allocation0 [shape = 'u32[]', space=smem, size = 0x4, offset = 0x4, fixed_abs, tag = 'smem constant byte address 0x4 - core index']
  #allocation1 [shape = 'u32[144,128]{1,0:T(1,128)}', space=vmem, size = 0x12000, scoped, tag = 'internal scratch']
  #allocation2 [shape = 's32[1]{0}', space=sflag, size = 0x4, scoped, tag = 'scoped memory for tpu_custom_call.1']
  #allocation3 [shape = 'u8[512]{0}', space=smem, size = 0x200, scoped, tag = 'prefetched SMEM operand 0']
  %s0 = inlined_call_operand.hbm [shape: f32[3], index: 0, kind: input, shape index: {}]
  %s1 = inlined_call_operand.hbm [shape: f32[8,512], index: 1, kind: input, shape index: {}]
  %s2 = inlined_call_operand.hbm [shape: f32[8,512], index: 2, kind: output, shape index: {}]
  %s3 = sld [smem:[#allocation0]]
  $region18: #{tpu_custom_call.1} parent=0
    _
  %s5 = ssub.s32 1, %s3
  %s6 = scalar_select 0, %s5, %s3
  %8 = dma.hbm_to_smem %s0, 16, [#allocation3], [#allocation2]
  %9 = dma.done [#allocation2], 16
  %10 = sfence
  $region1: #{tpu_custom_call.1} parent=0
    #allocation4 [shape = 'u8[16384]{0}', space=vmem, size = 0x4000, scoped, tag = 'input window, operand 1, single buffered']
    #allocation5 [shape = 's32[1]{0}', space=sflag, size = 0x4, scoped, tag = 'scoped memory for tpu_custom_call.1']
    #allocation6 [shape = 's32[1]{0}', space=sflag, size = 0x4, scoped, tag = 'scoped memory for tpu_custom_call.1']
    #allocation7 [shape = 'u8[16384]{0}', space=vmem, size = 0x4000, scoped, tag = 'output window, operand 0, single buffered']
    %11 = vsyncpa [#allocation5], 0
    %12 = vsyncpa [#allocation6], 0
    // Predicated region
    $region2: #{tpu_custom_call.1} parent=1 // pred_check
      _
    $region3: #{tpu_custom_call.1} parent=1 // pred_check_branch
      %14 = sbr.rel (0) target = $region5
    $region4: #{tpu_custom_call.1} parent=1 // pred_region
      %s16 = ssub.s32 512, 512
      %17 = vsyncadd [#allocation5], %s16
      %s19 = sshll.u32 [#allocation4], 4
      %s20 = int_to_ptr.vmem [resolvable:$true] %s19
      %22 = dma.hbm_to_vmem [thread:$0]  %s1, 512, %s20, [#allocation5]
    $region5: #{tpu_custom_call.1} parent=1 // pred_fallthru
      _
    // Predicated region
    $region6: #{tpu_custom_call.1} parent=1 // pred_check
      _
    $region7: #{tpu_custom_call.1} parent=1 // pred_check_branch
      %24 = sbr.rel (0) target = $region9
    $region8: #{tpu_custom_call.1} parent=1 // pred_region
      %25 = dma.done [#allocation5], 512
    $region9: #{tpu_custom_call.1} parent=1 // pred_fallthru
      _
    %s26 = sld [smem:[#allocation3]]
    %s27 = sld [smem:[#allocation3 + $0x1]]
    %s28 = sld [smem:[#allocation3 + $0x2]]
    %v29 = vld [vmem:[#allocation4] sm:$0xff]
    %v30 = vld [vmem:[#allocation4 + $0x8] sm:$0xff]
    %v31 = vld [vmem:[#allocation4 + $0x10] sm:$0xff]
    %v32 = vld [vmem:[#allocation4 + $0x18] sm:$0xff]
    %v33 = vstv %s26
    %v34 = vmul.f32 %v33, %v29
    %v35 = vmul.f32 %v33, %v30
    %v36 = vmul.f32 %v33, %v31
    %v37 = vmul.f32 %v33, %v32
    %v38 = vstv %s27
    %v39 = vadd.f32 %v34, %v38
    %v40 = vadd.f32 %v35, %v38
    %v41 = vadd.f32 %v36, %v38
    %v42 = vadd.f32 %v37, %v38
    %v43 = vmul.f32 %v39, %v29
    %v44 = vmul.f32 %v40, %v30
    %v45 = vmul.f32 %v41, %v31
    %v46 = vmul.f32 %v42, %v32
    %v47 = vstv %s28
    %v48 = vadd.f32 %v43, %v47
    %v49 = vadd.f32 %v44, %v47
    %v50 = vadd.f32 %v45, %v47
    %v51 = vadd.f32 %v46, %v47
    %52 = vst [vmem:[#allocation7] sm:$0xff] %v48
    %53 = vst [vmem:[#allocation7 + $0x8] sm:$0xff] %v49
    %54 = vst [vmem:[#allocation7 + $0x10] sm:$0xff] %v50
    %55 = vst [vmem:[#allocation7 + $0x18] sm:$0xff] %v51
    // Predicated region
    $region10: #{tpu_custom_call.1} parent=1 // pred_check
      _
    $region11: #{tpu_custom_call.1} parent=1 // pred_check_branch
      %57 = sbr.rel (0) target = $region13
    $region12: #{tpu_custom_call.1} parent=1 // pred_region
      %s59 = ssub.s32 512, 512
      %60 = vsyncadd [#allocation6], %s59
      %s62 = sshll.u32 [#allocation7], 4
      %s63 = int_to_ptr.vmem [resolvable:$true] %s62
      %65 = dma.vmem_to_hbm [thread:$0]  %s63, 512, %s2, [#allocation6]
    $region13: #{tpu_custom_call.1} parent=1 // pred_fallthru
      _
    // Predicated region
    $region14: #{tpu_custom_call.1} parent=1 // pred_check
      _
    $region15: #{tpu_custom_call.1} parent=1 // pred_check_branch
      %67 = sbr.rel (0) target = $region17
    $region16: #{tpu_custom_call.1} parent=1 // pred_region
      %68 = dma.done [#allocation6], 512
    $region17: #{tpu_custom_call.1} parent=1 // pred_fallthru
      _
    %69 = vsyncpa [#allocation5], 1
    %70 = vsyncpa [#allocation6], 1

</llo_original>
